<compile_context>
chip_gen: v5e
topology: v5e:2x2
jax: 0.10.0
libtpu: 0.0.40
codegen_flags: <defaults>
</compile_context>

<pallas_src>
import math
import functools

import jax
import jax.numpy as jnp
from jax import lax
from jax.experimental import pallas as pl
from jax.experimental.pallas import tpu as pltpu


def _round_up(x, m):
    return ((x + m - 1) // m) * m


def _dim_tile(dim, target, align):
    """Largest tile <= target that divides `dim` and is `align`-aligned.

    Returns `dim` itself when dim <= target (a full-extent block is always
    layout-legal); returns None when no aligned divisor exists."""
    if dim <= target:
        return dim
    t = target - target % align
    while t >= align:
        if dim % t == 0:
            return t
        t -= align
    return None


# ----------------------------- tiled linear (matmul + bias) ----------------------------------
def _linear_kernel(x_ref, w_ref, b_ref, o_ref, acc_ref):
    # x: (tm, tk) any float dtype (cast to bf16 on the VPU, hidden under the MXU),
    # w: (tk, tn) bf16, b: (1, tn) f32, acc: (tm, tn) f32
    k = pl.program_id(2)

    @pl.when(k == 0)
    def _init():
        acc_ref[...] = jnp.zeros_like(acc_ref)

    acc_ref[...] += jnp.dot(x_ref[...].astype(jnp.bfloat16),
                            w_ref[...].astype(jnp.bfloat16),
                            preferred_element_type=jnp.float32)

    @pl.when(k == pl.num_programs(2) - 1)
    def _store():
        # bias added exactly once, on the last K step
        o_ref[...] = (acc_ref[...] + b_ref[...]).astype(o_ref.dtype)


def linear(x2d, w, b, out_dtype=jnp.float32,
           tm_target=512, tn_target=512, tk_target=1024):
    """y = x2d @ w + b, tiled & pipelined, bf16 MXU inputs / fp32 accumulation.

    No HBM padding copies are made when M/K/N are already tile-aligned; x is
    cast to bf16 inside the kernel and w should be pre-cast to bf16 at init."""
    M, K = x2d.shape
    K2, N = w.shape
    assert K == K2 and b.shape == (N,)

    tm = _dim_tile(M, tm_target, 8) or (tm_target - tm_target % 8 or 8)
    tk = _dim_tile(K, tk_target, 128) or (tk_target - tk_target % 128 or 128)
    tn = _dim_tile(N, tn_target, 128) or (tn_target - tn_target % 128 or 128)
    Mp, Kp, Np = _round_up(M, tm), _round_up(K, tk), _round_up(N, tn)

    xb = x2d
    if (Mp, Kp) != (M, K):
        xb = jnp.zeros((Mp, Kp), x2d.dtype).at[:M, :K].set(x2d)
    wb = w.astype(jnp.bfloat16)
    if (Kp, Np) != (K, N):
        wb = jnp.zeros((Kp, Np), jnp.bfloat16).at[:K, :N].set(wb)
    bb = b.astype(jnp.float32).reshape(1, N)
    if Np != N:
        bb = jnp.zeros((1, Np), jnp.float32).at[:, :N].set(bb)

    grid = (Mp // tm, Np // tn, Kp // tk)
    out = pl.pallas_call(
        _linear_kernel,
        out_shape=jax.ShapeDtypeStruct((Mp, Np), out_dtype),
        grid_spec=pltpu.PrefetchScalarGridSpec(
            num_scalar_prefetch=0,
            grid=grid,
            in_specs=[
                pl.BlockSpec((tm, tk), lambda i, j, k: (i, k)),
                pl.BlockSpec((tk, tn), lambda i, j, k: (k, j)),
                pl.BlockSpec((1, tn), lambda i, j, k: (0, j)),
            ],
            out_specs=pl.BlockSpec((tm, tn), lambda i, j, k: (i, j)),
            scratch_shapes=[pltpu.VMEM((tm, tn), jnp.float32)],
        ),
        compiler_params=pltpu.CompilerParams(
            dimension_semantics=("parallel", "parallel", "arbitrary"),
            vmem_limit_bytes=32 * 1024 * 1024),
    )(xb, wb, bb)
    if (Mp, Np) != (M, N):
        out = out[:M, :N]
    return out


# ----------------------------- flash attention (per batch, all heads per step) ----------------
def _flash_attn_kernel(q_ref, k_ref, v_ref, pad_ref, o_ref,
                       m_ref, l_ref, acc_ref, *,
                       scale, causal, n_heads, head_dim, tq, tkv):
    qi = pl.program_id(1)
    ki = pl.program_id(2)
    nkv = pl.num_programs(2)
    d = head_dim
    H = n_heads

    @pl.when(ki == 0)
    def _init():
        # finite init (not -inf) keeps alpha = exp(m_old - m_new) NaN-free when a
        # whole kv tile is masked out (causal + padding).
        m_ref[...] = jnp.full_like(m_ref, -1e30)
        l_ref[...] = jnp.zeros_like(l_ref)
        acc_ref[...] = jnp.zeros_like(acc_ref)

    q_first = qi * tq
    k_first = ki * tkv

    def body(apply_causal):
        # per-batch padding mask block (1, nkv, tkv): pick the kv row with a
        # sublane dynamic slice (no per-step mask DMA).
        pad_row = pad_ref[0, pl.ds(ki, 1), :]          # (1, tkv) f32, 1.0 == padded key
        mask = pad_row > 0.5                           # broadcasts over query rows
        if apply_causal:
            row = q_first + lax.broadcasted_iota(jnp.int32, (tq, tkv), 0)
            col = k_first + lax.broadcasted_iota(jnp.int32, (tq, tkv), 1)
            mask = jnp.logical_or(mask, col > row)     # triu(ones, 1) future mask

        # fold 1/sqrt(d) into q once per tile, in f32, before the bf16 cast
        q = (q_ref[0] * jnp.float32(scale)).astype(jnp.bfloat16)   # (tq, F)
        k = k_ref[0].astype(jnp.bfloat16)                          # (tkv, F)
        v = v_ref[0].astype(jnp.bfloat16)                          # (tkv, F)

        neg_inf = jnp.float32(-jnp.inf)
        # TODO(synk): for n_heads >= 8-16 move heads onto a grid axis / fori_loop
        # to cap vreg pressure; the static unroll is fine for small head counts.
        for h in range(H):
            qh = q[:, h * d:(h + 1) * d]               # (tq, d)
            kh = k[:, h * d:(h + 1) * d]               # (tkv, d)
            vh = v[:, h * d:(h + 1) * d]               # (tkv, d)

            # contract the shared last dim directly (no K transpose), fp32 acc
            s = lax.dot_general(qh, kh, (((1,), (1,)), ((), ())),
                                preferred_element_type=jnp.float32)
            s = jnp.where(mask, neg_inf, s)

            m_prev = m_ref[h]                                        # (tq, 1)
            m_new = jnp.maximum(m_prev, jnp.max(s, axis=-1, keepdims=True))
            alpha = jnp.exp(m_prev - m_new)                          # (tq, 1)
            p = jnp.exp(s - m_new)                                   # (tq, tkv) f32
            l_ref[h] = alpha * l_ref[h] + jnp.sum(p, axis=-1, keepdims=True)
            acc_ref[h] = alpha * acc_ref[h] + jnp.dot(
                p.astype(jnp.bfloat16), vh, preferred_element_type=jnp.float32)
            m_ref[h] = m_new

    if causal:
        q_last = q_first + (tq - 1)
        k_last = k_first + (tkv - 1)
        visible = k_first <= q_last          # some key in the tile is attendable
        needs_causal = k_last > q_first      # tile straddles the diagonal

        @pl.when(jnp.logical_and(visible, needs_causal))
        def _diag():
            body(True)

        @pl.when(jnp.logical_and(visible, jnp.logical_not(needs_causal)))
        def _full():
            body(False)
    else:
        body(False)

    @pl.when(ki == nkv - 1)
    def _store():
        # TODO(synk): nn.Dropout on attention weights is identity (p=0.0 / eval mode).
        outs = []
        for h in range(H):
            l_h = l_ref[h]
            # rows with zero visible keys (fully padded batch) -> output 0, matching
            # the PyTorch all-pad masked_fill (and avoiding NaNs).
            l_h = jnp.where(l_h == 0.0, 1.0, l_h)
            outs.append(acc_ref[h] * pl.reciprocal(l_h, approx=True))
        # single lane-dense store of the whole (tq, F) q tile
        o_ref[0] = jnp.concatenate(outs, axis=-1).astype(o_ref.dtype)


def attention(qkv, padding_mask, *, n_heads, n_features, causal=True,
              out_dtype=jnp.bfloat16, tq_target=256, tkv_target=512):
    """Flash-style MHA over a packed (B, T, 3F) qkv activation."""
    B, T, three_f = qkv.shape
    F = n_features
    assert three_f == 3 * F and F % n_heads == 0
    d = F // n_heads
    scale = 1.0 / math.sqrt(d)

    # v7x (64 MiB VMEM) budget: shrink tiles when the model dim gets large.
    if F >= 2048:
        tkv_target = min(tkv_target, 256)
    if F >= 4096:
        tq_target = min(tq_target, 128)

    tq = _dim_tile(T, tq_target, 8)
    tkv = _dim_tile(T, tkv_target, 128)
    if tq is None or tkv is None:
        # no aligned divisor: pad T to a multiple of 128 (padded keys masked below)
        Tp = _round_up(T, 128)
        tq = _dim_tile(Tp, tq_target, 8)
        tkv = _dim_tile(Tp, tkv_target, 128)
    else:
        Tp = T

    pad_f = padding_mask.astype(jnp.float32)
    if Tp != T:
        qkv = jnp.zeros((B, Tp, three_f), qkv.dtype).at[:, :T, :].set(qkv)
        pad_f = jnp.ones((B, Tp), jnp.float32).at[:, :T].set(pad_f)

    nq, nkv = Tp // tq, Tp // tkv
    # v7x megacore: keep >= 2 steps on the parallel axes so both TensorCores get work
    if B * nq < 2 and tq % 16 == 0:
        tq //= 2
        nq = Tp // tq

    if causal:
        def kv_block(qi, ki):
            # clamp future kv tiles to the last visible one -> no wasted DMA
            return jnp.minimum(ki, (qi * tq + tq - 1) // tkv)
    else:
        def kv_block(qi, ki):
            return ki

    # padding mask fetched once per batch as (1, nkv, tkv)
    pad_tiles = pad_f.reshape(B, nkv, tkv)

    if F % 128 == 0:
        # feed the packed qkv directly; BlockSpecs pick the q/k/v slab on the last dim
        q_arr = k_arr = v_arr = qkv
        q_blk, k_blk, v_blk = 0, 1, 2
    else:
        # unaligned (toy) model dim: fall back to explicit q/k/v slices
        q_arr = qkv[..., :F]
        k_arr = qkv[..., F:2 * F]
        v_arr = qkv[..., 2 * F:]
        q_blk, k_blk, v_blk = 0, 0, 0

    kernel = functools.partial(_flash_attn_kernel, scale=scale, causal=causal,
                               n_heads=n_heads, head_dim=d, tq=tq, tkv=tkv)

    out = pl.pallas_call(
        kernel,
        out_shape=jax.ShapeDtypeStruct((B, Tp, F), out_dtype),
        grid_spec=pltpu.PrefetchScalarGridSpec(
            num_scalar_prefetch=0,
            grid=(B, nq, nkv),
            in_specs=[
                pl.BlockSpec((1, tq, F), lambda b, qi, ki: (b, qi, q_blk)),
                pl.BlockSpec((1, tkv, F), lambda b, qi, ki: (b, kv_block(qi, ki), k_blk)),
                pl.BlockSpec((1, tkv, F), lambda b, qi, ki: (b, kv_block(qi, ki), v_blk)),
                pl.BlockSpec((1, nkv, tkv), lambda b, qi, ki: (b, 0, 0)),
            ],
            out_specs=pl.BlockSpec((1, tq, F), lambda b, qi, ki: (b, qi, 0)),
            scratch_shapes=[
                pltpu.VMEM((n_heads, tq, 1), jnp.float32),   # running max m
                pltpu.VMEM((n_heads, tq, 1), jnp.float32),   # running sum l
                pltpu.VMEM((n_heads, tq, d), jnp.float32),   # output accumulator
            ],
        ),
        compiler_params=pltpu.CompilerParams(
            dimension_semantics=("parallel", "parallel", "arbitrary"),
            vmem_limit_bytes=32 * 1024 * 1024),
    )(q_arr, k_arr, v_arr, pad_tiles)

    return out if Tp == T else out[:, :T, :]


# ----------------------------- module wrapper -------------------------------------------------
def init_params(key, n_features):
    k1, k2, k3, k4 = jax.random.split(key, 4)
    F = n_features
    bound = 1.0 / math.sqrt(F)
    return {
        # stored (F_in, F_out) == transpose of torch nn.Linear weight, pre-cast to bf16
        "w_qkv": (0.02 * jax.random.normal(k1, (F, 3 * F), jnp.float32)).astype(jnp.bfloat16),
        "b_qkv": jax.random.uniform(k2, (3 * F,), jnp.float32, -bound, bound),
        "w_out": (0.02 * jax.random.normal(k3, (F, F), jnp.float32)).astype(jnp.bfloat16),
        "b_out": jax.random.uniform(k4, (F,), jnp.float32, -bound, bound),
    }


def mha_forward(x, padding_mask, params, n_heads):
    """Self-attention (qkv_same) path of the PyTorch module, with causal future mask."""
    # TODO(synk): the kv_same cross-attention branch of the PyTorch module is not implemented.
    B, T, F = x.shape
    qkv = linear(x.reshape(B * T, F), params["w_qkv"], params["b_qkv"],
                 out_dtype=jnp.bfloat16)                       # (B*T, 3F) bf16
    qkv = qkv.reshape(B, T, 3 * F)                             # free reshape; q|k|v slabs

    attn = attention(qkv, padding_mask, n_heads=n_heads, n_features=F,
                     causal=True, out_dtype=jnp.bfloat16)      # (B, T, F) bf16

    out = linear(attn.reshape(B * T, F), params["w_out"], params["b_out"],
                 out_dtype=jnp.float32)
    return out.reshape(B, T, F)


# ----------------------------- pure-JAX reference (mirrors bf16 matmul inputs) ----------------
def mha_reference(x, padding_mask, params, n_heads):
    B, T, F = x.shape
    d = F // n_heads
    bf = jnp.bfloat16
    scale = 1.0 / math.sqrt(d)

    qkv = (jnp.dot(x.reshape(B * T, F).astype(bf), params["w_qkv"].astype(bf),
                   preferred_element_type=jnp.float32) + params["b_qkv"]).astype(bf)
    qkv = qkv.reshape(B, T, 3 * F)
    q, k, v = qkv[..., :F], qkv[..., F:2 * F], qkv[..., 2 * F:]

    def split_heads(t):
        return t.reshape(B, T, n_heads, d).transpose(0, 2, 1, 3)

    qh = (split_heads(q).astype(jnp.float32) * scale).astype(bf)   # scale folded into q
    kh, vh = split_heads(k), split_heads(v)
    w = jnp.einsum("bhqd,bhkd->bhqk", qh, kh, preferred_element_type=jnp.float32)
    causal = jnp.triu(jnp.ones((T, T), bool), 1)
    w = jnp.where(causal[None, None], -jnp.inf, w)
    w = jnp.where(padding_mask[:, None, None, :], -jnp.inf, w)
    w = jax.nn.softmax(w, axis=-1)
    all_pad = jnp.all(padding_mask, axis=-1)[:, None, None, None]
    w = jnp.where(all_pad, 0.0, w)
    o = jnp.einsum("bhqk,bhkd->bhqd", w.astype(bf), vh,
                   preferred_element_type=jnp.float32)
    o = o.transpose(0, 2, 1, 3).reshape(B * T, F).astype(bf)
    out = jnp.dot(o, params["w_out"].astype(bf),
                  preferred_element_type=jnp.float32) + params["b_out"]
    return out.reshape(B, T, F)


if __name__ == "__main__":
    configs = [
        (2, 8, 32, 4),     # F % 128 != 0 -> fallback q/k/v slice path
        (2, 16, 128, 4),   # F % 128 == 0 -> fused qkv-slab path
    ]
    for (B, T, F, H) in configs:
        key = jax.random.PRNGKey(0)
        kp, kx = jax.random.split(key)
        params = init_params(kp, F)
        x = jax.random.normal(kx, (B, T, F), dtype=jnp.float32)

        # padding_mask: True == padded key position; batch 1 has last 3 positions padded
        padding_mask = jnp.zeros((B, T), dtype=bool).at[1, T - 3:].set(True)

        out = jax.block_until_ready(mha_forward(x, padding_mask, params, H))
        ref = mha_reference(x, padding_mask, params, H)
        assert out.shape == (B, T, F)
        err = jnp.max(jnp.abs(out - ref))
        assert bool(jnp.isfinite(err)) and float(err) < 1e-2, \
            f"mismatch vs reference at (B,T,F,H)={(B, T, F, H)}: {err}"

    print("KERNEL_OK")
</pallas_src>

<mosaic_0001>
module attributes {stable_mosaic.version = 11 : i64} {
  func.func @_linear_kernel(%arg0: i32, %arg1: i32, %arg2: i32, %arg3: memref<16x32xf32, #tpu.memory_space<vmem>>, %arg4: memref<32x96xbf16, #tpu.memory_space<vmem>>, %arg5: memref<1x96xf32, #tpu.memory_space<vmem>>, %arg6: memref<16x96xbf16, #tpu.memory_space<vmem>>, %arg7: memref<16x96xf32, #tpu.memory_space<vmem>>) attributes {dimension_semantics = [#tpu.dimension_semantics<parallel>, #tpu.dimension_semantics<parallel>, #tpu.dimension_semantics<arbitrary>], iteration_bounds = array<i64: 1, 1, 1>, scalar_prefetch = 0 : i64, scratch_operands = 1 : i64, tpu.core_type = #tpu.core_type<tc>, window_params = [{transform_indices = @transform_0, window_bounds = array<i64: 16, 32>}, {transform_indices = @transform_1, window_bounds = array<i64: 32, 96>}, {transform_indices = @transform_2, window_bounds = array<i64: 1, 96>}, {transform_indices = @transform_3, window_bounds = array<i64: 16, 96>}]} {
    %c0_i32 = arith.constant 0 : i32
    %0 = arith.cmpi eq, %arg2, %c0_i32 : i32
    %1 = arith.extui %0 : i1 to i32
    %c0_i32_0 = arith.constant 0 : i32
    %2 = arith.cmpi ne, %1, %c0_i32_0 : i32
    scf.if %2 {
      %cst_10 = arith.constant 0.000000e+00 : f32
      %13 = vector.broadcast %cst_10 : f32 to vector<16x96xf32>
      %c0_11 = arith.constant 0 : index
      %c0_12 = arith.constant 0 : index
      %14 = vector.load %arg7[%c0_11, %c0_12] : memref<16x96xf32, #tpu.memory_space<vmem>>, vector<16x96xf32>
      tpu.vector_store %arg7[%c0_11, %c0_12], %13 {strides = array<i32>} : memref<16x96xf32, #tpu.memory_space<vmem>>, vector<16x96xf32>,
    } else {
    }
    %c0 = arith.constant 0 : index
    %c0_1 = arith.constant 0 : index
    %3 = vector.load %arg7[%c0, %c0_1] : memref<16x96xf32, #tpu.memory_space<vmem>>, vector<16x96xf32>
    %c0_2 = arith.constant 0 : index
    %c0_3 = arith.constant 0 : index
    %4 = vector.load %arg3[%c0_2, %c0_3] : memref<16x32xf32, #tpu.memory_space<vmem>>, vector<16x32xf32>
    %5 = arith.truncf %4 : vector<16x32xf32> to vector<16x32xbf16>
    %c0_4 = arith.constant 0 : index
    %c0_5 = arith.constant 0 : index
    %6 = vector.load %arg4[%c0_4, %c0_5] : memref<32x96xbf16, #tpu.memory_space<vmem>>, vector<32x96xbf16>
    %cst = arith.constant dense<0.000000e+00> : vector<16x96xf32>
    %7 = tpu.matmul %5, %6, %cst {dimension_numbers = #tpu.dot_dimension_numbers<[1], [0], [0], [1], [0, 0, 1, 1], [], []>} : vector<16x32xbf16>, vector<32x96xbf16>, vector<16x96xf32> -> vector<16x96xf32>
    %8 = arith.addf %3, %7 : vector<16x96xf32>
    %c0_6 = arith.constant 0 : index
    %c0_7 = arith.constant 0 : index
    %9 = vector.load %arg7[%c0_6, %c0_7] : memref<16x96xf32, #tpu.memory_space<vmem>>, vector<16x96xf32>
    tpu.vector_store %arg7[%c0_6, %c0_7], %8 {strides = array<i32>} : memref<16x96xf32, #tpu.memory_space<vmem>>, vector<16x96xf32>,
    %c0_i32_8 = arith.constant 0 : i32
    %10 = arith.cmpi eq, %arg2, %c0_i32_8 : i32
    %11 = arith.extui %10 : i1 to i32
    %c0_i32_9 = arith.constant 0 : i32
    %12 = arith.cmpi ne, %11, %c0_i32_9 : i32
    scf.if %12 {
      %c0_10 = arith.constant 0 : index
      %c0_11 = arith.constant 0 : index
      %13 = vector.load %arg7[%c0_10, %c0_11] : memref<16x96xf32, #tpu.memory_space<vmem>>, vector<16x96xf32>
      %c0_12 = arith.constant 0 : index
      %c0_13 = arith.constant 0 : index
      %14 = vector.load %arg5[%c0_12, %c0_13] : memref<1x96xf32, #tpu.memory_space<vmem>>, vector<1x96xf32>
      %15 = vector.broadcast %14 : vector<1x96xf32> to vector<16x96xf32>
      %16 = arith.addf %13, %15 : vector<16x96xf32>
      %17 = arith.truncf %16 : vector<16x96xf32> to vector<16x96xbf16>
      %c0_14 = arith.constant 0 : index
      %c0_15 = arith.constant 0 : index
      %18 = vector.load %arg6[%c0_14, %c0_15] : memref<16x96xbf16, #tpu.memory_space<vmem>>, vector<16x96xbf16>
      tpu.vector_store %arg6[%c0_14, %c0_15], %17 {strides = array<i32>} : memref<16x96xbf16, #tpu.memory_space<vmem>>, vector<16x96xbf16>,
    } else {
    }
    return
  }
  func.func @transform_0(%arg0: i32, %arg1: i32, %arg2: i32) -> (i32, i32) {
    %c0_i32 = arith.constant 0 : i32
    return %arg0, %arg2 : i32, i32
  }
  func.func @transform_1(%arg0: i32, %arg1: i32, %arg2: i32) -> (i32, i32) {
    %c0_i32 = arith.constant 0 : i32
    return %arg2, %arg1 : i32, i32
  }
  func.func @transform_2(%arg0: i32, %arg1: i32, %arg2: i32) -> (i32, i32) {
    %c0_i32 = arith.constant 0 : i32
    %c0_i32_0 = arith.constant 0 : i32
    return %c0_i32, %arg1 : i32, i32
  }
  func.func @transform_3(%arg0: i32, %arg1: i32, %arg2: i32) -> (i32, i32) {
    %c0_i32 = arith.constant 0 : i32
    return %arg0, %arg1 : i32, i32
  }
}

</mosaic_0001>

<llo_original>
// kernel: tpu_custom_call.1
$region0: #{tpu_custom_call.1}
  #allocation0 [shape = 'u32[]', space=smem, size = 0x4, offset = 0x4, fixed_abs, tag = 'smem constant byte address 0x4 - core index']
  #allocation1 [shape = 'u32[72,128]{1,0:T(1,128)}', space=vmem, size = 0x9000, scoped, tag = 'internal scratch']
  #allocation2 [shape = 'f32[16,96]{1,0:T(8,128)}', space=vmem, size = 0x2000, scoped, tag = 'scratch operand']
  %s0 = inlined_call_operand.hbm [shape: f32[16,32], index: 0, kind: input, shape index: {}]
  %s1 = inlined_call_operand.hbm [shape: bf16[32,96], index: 1, kind: input, shape index: {}]
  %s2 = inlined_call_operand.vmem [shape: f32[1,96], index: 2, kind: input, shape index: {}]
  %s3 = inlined_call_operand.hbm [shape: bf16[16,96], index: 3, kind: output, shape index: {}]
  %s4 = sld [smem:[#allocation0]]
  $region38: #{tpu_custom_call.1} parent=0
    _
  %s6 = ssub.s32 1, %s4
  %s7 = scalar_select 0, %s6, %s4
  $region1: #{tpu_custom_call.1} parent=0
    #allocation3 [shape = 'u8[8192]{0}', space=vmem, size = 0x2000, scoped, tag = 'input window, operand 0, single buffered']
    #allocation4 [shape = 's32[1]{0}', space=sflag, size = 0x4, scoped, tag = 'scoped memory for tpu_custom_call.1']
    #allocation5 [shape = 's32[1]{0}', space=sflag, size = 0x4, scoped, tag = 'scoped memory for tpu_custom_call.1']
    #allocation6 [shape = 'u8[8192]{0}', space=vmem, size = 0x2000, scoped, tag = 'input window, operand 1, single buffered']
    #allocation7 [shape = 's32[1]{0}', space=sflag, size = 0x4, scoped, tag = 'scoped memory for tpu_custom_call.1']
    #allocation8 [shape = 'u8[4096]{0}', space=vmem, size = 0x1000, scoped, tag = 'output window, operand 0, single buffered']
    %8 = vsyncpa [#allocation4], 0
    %9 = vsyncpa [#allocation7], 0
    %10 = vsyncpa [#allocation5], 0
    // Predicated region
    $region2: #{tpu_custom_call.1} parent=1 // pred_check
      _
    $region3: #{tpu_custom_call.1} parent=1 // pred_check_branch
      %12 = sbr.rel (0) target = $region5
    $region4: #{tpu_custom_call.1} parent=1 // pred_region
      %14 = vsyncadd [#allocation4], 0
      %s15 = sshll.u32 %s0, 4
      %s16 = int_to_ptr.hbm [resolvable:$true] %s15
      %s17 = sshll.u32 [#allocation3], 4
      %s18 = int_to_ptr.vmem [resolvable:$true] %s17
      %23 = dma.hbm_to_vmem [thread:$0]  %s16, 256, %s18, [#allocation4], 128, 128, 8
    $region5: #{tpu_custom_call.1} parent=1 // pred_fallthru
      _
    // Predicated region
    $region6: #{tpu_custom_call.1} parent=1 // pred_check
      _
    $region7: #{tpu_custom_call.1} parent=1 // pred_check_branch
      %25 = sbr.rel (0) target = $region9
    $region8: #{tpu_custom_call.1} parent=1 // pred_region
      %27 = vsyncadd [#allocation7], 0
      %s28 = sshll.u32 %s1, 4
      %s29 = int_to_ptr.hbm [resolvable:$true] %s28
      %s30 = sshll.u32 [#allocation6], 4
      %s31 = int_to_ptr.vmem [resolvable:$true] %s30
      %36 = dma.hbm_to_vmem [thread:$0]  %s29, 256, %s31, [#allocation7], 64, 64, 4
    $region9: #{tpu_custom_call.1} parent=1 // pred_fallthru
      _
    // Predicated region
    $region10: #{tpu_custom_call.1} parent=1 // pred_check
      _
    $region11: #{tpu_custom_call.1} parent=1 // pred_check_branch
      %38 = sbr.rel (0) target = $region13
    $region12: #{tpu_custom_call.1} parent=1 // pred_region
      _
    $region13: #{tpu_custom_call.1} parent=1 // pred_fallthru
      _
    // Predicated region
    $region14: #{tpu_custom_call.1} parent=1 // pred_check
      _
    $region15: #{tpu_custom_call.1} parent=1 // pred_check_branch
      %40 = sbr.rel (0) target = $region17
    $region16: #{tpu_custom_call.1} parent=1 // pred_region
      %42 = dma.done [#allocation4], 256
    $region17: #{tpu_custom_call.1} parent=1 // pred_fallthru
      _
    // Predicated region
    $region18: #{tpu_custom_call.1} parent=1 // pred_check
      _
    $region19: #{tpu_custom_call.1} parent=1 // pred_check_branch
      %44 = sbr.rel (0) target = $region21
    $region20: #{tpu_custom_call.1} parent=1 // pred_region
      %46 = dma.done [#allocation7], 256
    $region21: #{tpu_custom_call.1} parent=1 // pred_fallthru
      _
    %p48 = scmp.eq.s32.totalorder 0, 0
    // Predicated region
    $region22: #{tpu_custom_call.1} parent=1 // pred_check
      %p49 = pneg %p48
    $region23: #{tpu_custom_call.1} parent=1 // pred_check_branch
      %51 = sbr.rel (%p49) target = $region25
    $region24: #{tpu_custom_call.1} parent=1 // pred_region
      %vm52 = vcmask 785408
      %53 = vst.msk [vmem:[#allocation2] sm:$0xff] %vm52, 0.0
      %54 = vst.msk [vmem:[#allocation2 + $0x8] sm:$0xff] %vm52, 0.0
    $region25: #{tpu_custom_call.1} parent=1 // pred_fallthru
      _
    %v55 = vld [vmem:[#allocation2] sm:$0xff]
    %v56 = vld [vmem:[#allocation2 + $0x8] sm:$0xff]
    %v57 = vld [vmem:[#allocation3] sm:$0xff]
    %v58 = vld [vmem:[#allocation3 + $0x8] sm:$0xff]
    %v59 = vpack.c.bf16 %v58, %v57
    %v60 = vld [vmem:[#allocation6] sm:$0xf]
    %v61 = vld [vmem:[#allocation6 + $0x4] sm:$0xf]
    %v62 = vld [vmem:[#allocation6 + $0x8] sm:$0xf]
    %v63 = vld [vmem:[#allocation6 + $0xc] sm:$0xf]
    %v68 = vunpack.c.l.b16 %v60
    %v69 = vunpack.c.l.b16 %v61
    %v70 = vunpack.c.l.b16 %v62
    %v71 = vunpack.c.l.b16 %v63
    %v72 = vpack.c.b16 %v69, %v68
    %v73 = vpack.c.b16 %v71, %v70
    %vm76 = vcmask 261120
    %v78 = vsel %vm76, %v59, 0
    %80 = vmatpush.bf16.msra.mxu0 0
    %81 = vmatpush.bf16.msra.mxu0 0
    %82 = vmatpush.bf16.msra.mxu0 0
    %83 = vmatpush.bf16.msra.mxu0 0
    %84 = vmatpush.bf16.msra.mxu0 0
    %85 = vmatpush.bf16.msra.mxu0 0
    %86 = vmatpush.bf16.msra.mxu0 %v73
    %87 = vmatpush.bf16.msra.mxu0 %v72
    %88 = vmatmul.bf16.gmra.mxu0 %v78
    %v89 = vpop.f32.mrf.mxu0
    %v90 = vadd.f32 0.0, %v89
    %v91 = vpop.f32.mrf.mxu0
    %v92 = vadd.f32 0.0, %v91
    %93 = vdwg.mxu0
    %v94 = vadd.f32 %v55, %v90
    %v95 = vadd.f32 %v56, %v92
    %vm96 = vcmask 785408
    %97 = vst.msk [vmem:[#allocation2] sm:$0xff] %vm96, %v94
    %98 = vst.msk [vmem:[#allocation2 + $0x8] sm:$0xff] %vm96, %v95
    // Predicated region
    $region26: #{tpu_custom_call.1} parent=1 // pred_check
      %p99 = pneg %p48
    $region27: #{tpu_custom_call.1} parent=1 // pred_check_branch
      %101 = sbr.rel (%p99) target = $region29
    $region28: #{tpu_custom_call.1} parent=1 // pred_region
      %v102 = vld [vmem:[#allocation2] sm:$0xff]
      %v103 = vld [vmem:[#allocation2 + $0x8] sm:$0xff]
      %v104 = vld [vmem:[%s2] sm:$0x1]
      %v106 = vperm.slane %v104, 0
      %v108 = vadd.f32 %v102, %v106
      %v109 = vadd.f32 %v103, %v106
      %v110 = vpack.c.bf16 %v108, %v108
      %v111 = vpack.c.bf16 %v109, %v109
      %vm112 = vcmask 781312
      %113 = vst.msk [vmem:[#allocation8] sm:$0xf] %vm112, %v110
      %114 = vst.msk [vmem:[#allocation8 + $0x4] sm:$0xf] %vm112, %v111
    $region29: #{tpu_custom_call.1} parent=1 // pred_fallthru
      _
    // Predicated region
    $region30: #{tpu_custom_call.1} parent=1 // pred_check
      _
    $region31: #{tpu_custom_call.1} parent=1 // pred_check_branch
      %116 = sbr.rel (0) target = $region33
    $region32: #{tpu_custom_call.1} parent=1 // pred_region
      %118 = vsyncadd [#allocation5], 0
      %s119 = sshll.u32 [#allocation8], 4
      %s120 = int_to_ptr.vmem [resolvable:$true] %s119
      %s121 = sshll.u32 %s3, 4
      %s122 = int_to_ptr.hbm [resolvable:$true] %s121
      %127 = dma.vmem_to_hbm [thread:$0]  %s120, 128, %s122, [#allocation5], 64, 64, 4
    $region33: #{tpu_custom_call.1} parent=1 // pred_fallthru
      _
    // Predicated region
    $region34: #{tpu_custom_call.1} parent=1 // pred_check
      _
    $region35: #{tpu_custom_call.1} parent=1 // pred_check_branch
      %129 = sbr.rel (0) target = $region37
    $region36: #{tpu_custom_call.1} parent=1 // pred_region
      %131 = dma.done [#allocation5], 128
    $region37: #{tpu_custom_call.1} parent=1 // pred_fallthru
      _
    %132 = vsyncpa [#allocation4], 1
    %133 = vsyncpa [#allocation7], 1
    %134 = vsyncpa [#allocation5], 1

</llo_original>
